<compile_context>
chip_gen: v5e
topology: v5e:2x2
jax: 0.10.0
libtpu: 0.0.40
codegen_flags: <defaults>
</compile_context>

<pallas_src>
import functools

import jax
import jax.numpy as jnp
from jax import lax
from jax.experimental import pallas as pl
from jax.experimental.pallas import tpu as pltpu


_SUBLANE = 8
_LANE = 128

# Worth sweeping to 3 on v5e (lowest HBM bandwidth) if profiling shows exposed
# input DMA at step boundaries; the VMEM budget below accounts for this knob.
_X_INPUT_BUFFER_COUNT = 2


def _round_up(a, b):
    return ((a + b - 1) // b) * b


def _tpu_vmem_capacity_bytes():
    """Physical VMEM per core; falls back to 128 MiB if the query fails."""
    try:
        info = pltpu.get_tpu_info()
        cap = getattr(info, "vmem_capacity_bytes", None)
        if cap:
            return int(cap)
    except Exception:
        pass
    return 128 * 1024 * 1024


def _vmem_policy():
    """Returns (block budget bytes, vmem_limit_bytes, multi_core_hint)."""
    cap = _tpu_vmem_capacity_bytes()
    if cap <= 64 * 1024 * 1024:
        # v7x-class: 64 MiB physical VMEM, 2 TensorCores per chip.
        return 24 * 1024 * 1024, 32 * 1024 * 1024, True
    # v5e / v6e: 128 MiB physical VMEM, single TensorCore -> bigger tiles.
    return 48 * 1024 * 1024, 64 * 1024 * 1024, False


def _channel_align(itemsize):
    # Sub-32-bit dtypes pack along sublanes (bf16 -> 16, int8/fp8 -> 32).
    return _SUBLANE * max(1, 4 // itemsize)


def _x_spec(block_shape, index_map):
    if _X_INPUT_BUFFER_COUNT != 2:
        return pl.BlockSpec(block_shape, index_map,
                            pipeline_mode=pl.Buffered(_X_INPUT_BUFFER_COUNT))
    return pl.BlockSpec(block_shape, index_map)


def _fast_path_tiling(C, N, HW, itemsize, budget, multi_core):
    """Channel tile for the single-pass path, or None if it cannot fit VMEM."""
    hw_p = _round_up(HW, _LANE)  # lane padding of the x / out blocks in VMEM
    # Per channel: multi-buffered input + double-buffered output x blocks, one
    # f32 temp ((x - mean) kept live through the variance reduction and store),
    # plus the lane-padded (tc, N) gamma/beta buffers.
    per_channel = (N * hw_p * itemsize * (_X_INPUT_BUFFER_COUNT + 2)
                   + N * hw_p * 4
                   + 4 * 4 * max(N, _LANE))
    align = _channel_align(itemsize)
    if C <= align:
        tc = C
        if tc * per_channel > budget:
            return None                      # -> two-pass HW-split fallback
    else:
        if align * per_channel > budget:
            return None                      # even min aligned tile won't fit
        tc = (budget // per_channel // align) * align
        tc = min(max(tc, align), C)
    if multi_core and C > align:
        # Keep >= 2 channel tiles so the "parallel" axis feeds both TensorCores.
        half = _round_up(-(-C // 2), align)
        if half < C:
            tc = min(tc, half)
    return tc


def _fallback_tiling(C, N, HW, itemsize, budget):
    """(tc, t_hw) tiling for the two-pass stats + apply fallback."""
    align = _channel_align(itemsize)
    tc = C if C <= align else align
    # Bytes per lane-column of an apply-pass step (in + out multi-buffered,
    # plus an f32 temp for the promoted elementwise path).
    per_col = N * tc * (itemsize * (_X_INPUT_BUFFER_COUNT + 2) + 4)
    t_hw = (budget // per_col // _LANE) * _LANE
    # TODO(synk): if even (N, tc, 128) exceeds VMEM (extremely large N), a batch
    # split would also be required; not implemented.
    t_hw = max(_LANE, min(t_hw, _round_up(HW, _LANE)))
    return tc, t_hw


# ----------------------------- kernels -------------------------------------


def _cbn_fused_kernel(x_ref, gamma_ref, beta_ref, o_ref, *, eps):
    # x_ref: (N, TC, HW)  -- one channel tile, all batch & spatial elements
    # gamma_ref, beta_ref: (TC, N) f32, lane-dense on the batch axis
    # o_ref:  (N, TC, HW)
    x = x_ref[...]
    n, _, hw = x.shape
    inv_cnt = jnp.float32(1.0 / (n * hw))

    xf = x.astype(jnp.float32)
    mean = jnp.sum(xf, axis=(0, 2), keepdims=True) * inv_cnt        # (1,TC,1)
    d = xf - mean
    # Shifted (two-pass on the resident block) biased variance.
    var = jnp.sum(d * d, axis=(0, 2), keepdims=True) * inv_cnt      # (1,TC,1)
    rstd = lax.rsqrt(var + jnp.float32(eps))

    gamma = jnp.transpose(gamma_ref[...])[:, :, None]               # (N,TC,1)
    beta = jnp.transpose(beta_ref[...])[:, :, None]                 # (N,TC,1)
    scale = gamma * rstd
    # out = gamma * (x - mean) * rstd + beta = d * scale + beta
    o_ref[...] = (d * scale + beta).astype(o_ref.dtype)


def _cbn_stats_kernel(x_ref, s1_ref, s2_ref, *, hw_total, t_hw):
    # x_ref: (N, TC, THW); s1_ref/s2_ref: (TC, 1) f32, resident across HW steps.
    h = pl.program_id(1)

    @pl.when(h == 0)
    def _init():
        s1_ref[...] = jnp.zeros_like(s1_ref)
        s2_ref[...] = jnp.zeros_like(s2_ref)

    x = x_ref[...]
    if hw_total % t_hw:  # static: mask the ragged HW tail of the last block
        rem = hw_total - h * t_hw
        idx = lax.broadcasted_iota(jnp.int32, x.shape, 2)
        x = jnp.where(idx < rem, x, jnp.zeros([], x.dtype))

    xf = x.astype(jnp.float32)
    # NOTE: fallback uses E[x^2] - mean^2 (clamped in the wrapper); the fused
    # path uses the shifted form.  Accumulation is f32.
    s1_ref[...] += jnp.sum(xf, axis=(0, 2), keepdims=True)[0]       # (TC,1)
    s2_ref[...] += jnp.sum(xf * xf, axis=(0, 2), keepdims=True)[0]  # (TC,1)


def _cbn_apply_kernel(x_ref, scale_ref, bias_ref, o_ref):
    # x_ref: (N, TC, THW); scale_ref/bias_ref: (TC, N) f32 (precomputed).
    scale = jnp.transpose(scale_ref[...])[:, :, None]               # (N,TC,1)
    bias = jnp.transpose(bias_ref[...])[:, :, None]
    o_ref[...] = (x_ref[...].astype(jnp.float32) * scale
                  + bias).astype(o_ref.dtype)


# ----------------------------- wrapper --------------------------------------


def conditional_batch_norm_2d(x, y, w_gamma, w_beta, eps=1e-4,
                              block_budget_bytes=None):
    """x: (N, C, H, W) NCHW, y: (N, num_classes). Returns (N, C, H, W)."""
    N, C, H, W = x.shape
    HW = H * W
    x_r = x.reshape(N, C, HW)  # free reshape, no transpose
    itemsize = jnp.dtype(x.dtype).itemsize

    # Conditional affine parameters: tiny matmuls (K << MXU depth) stay in XLA.
    gamma = (jnp.dot(y, w_gamma.T, preferred_element_type=jnp.float32)
             + 1.0).astype(jnp.float32)                              # (N, C)
    beta = jnp.dot(y, w_beta.T,
                   preferred_element_type=jnp.float32).astype(jnp.float32)

    budget, vmem_limit, multi_core = _vmem_policy()
    if block_budget_bytes is not None:
        budget = block_budget_bytes

    tc = _fast_path_tiling(C, N, HW, itemsize, budget, multi_core)

    if tc is not None:
        # ---------------- fast path: single pass, channel-tiled --------------
        grid = (pl.cdiv(C, tc),)
        out_r = pl.pallas_call(
            functools.partial(_cbn_fused_kernel, eps=eps),
            out_shape=jax.ShapeDtypeStruct((N, C, HW), x.dtype),
            grid_spec=pltpu.PrefetchScalarGridSpec(
                num_scalar_prefetch=0,
                grid=grid,
                in_specs=[
                    _x_spec((N, tc, HW), lambda c: (0, c, 0)),       # x tile
                    pl.BlockSpec((tc, N), lambda c: (c, 0)),         # gamma^T
                    pl.BlockSpec((tc, N), lambda c: (c, 0)),         # beta^T
                ],
                out_specs=pl.BlockSpec((N, tc, HW), lambda c: (0, c, 0)),
            ),
            compiler_params=pltpu.CompilerParams(
                dimension_semantics=("parallel",),
                vmem_limit_bytes=vmem_limit,
            ),
            cost_estimate=pl.CostEstimate(
                flops=7 * N * C * HW,
                transcendentals=C,
                bytes_accessed=2 * N * C * HW * itemsize + 8 * N * C,
            ),
        )(x_r, gamma.T, beta.T)
        return out_r.reshape(N, C, H, W)

    # ------------- fallback: N*HW too large -> two passes over (C, HW) -------
    tc, t_hw = _fallback_tiling(C, N, HW, itemsize, budget)
    grid = (pl.cdiv(C, tc), pl.cdiv(HW, t_hw))

    s1, s2 = pl.pallas_call(
        functools.partial(_cbn_stats_kernel, hw_total=HW, t_hw=t_hw),
        out_shape=(jax.ShapeDtypeStruct((C, 1), jnp.float32),
                   jax.ShapeDtypeStruct((C, 1), jnp.float32)),
        grid_spec=pltpu.PrefetchScalarGridSpec(
            num_scalar_prefetch=0,
            grid=grid,
            in_specs=[_x_spec((N, tc, t_hw), lambda c, h: (0, c, h))],
            out_specs=[pl.BlockSpec((tc, 1), lambda c, h: (c, 0)),
                       pl.BlockSpec((tc, 1), lambda c, h: (c, 0))],
        ),
        compiler_params=pltpu.CompilerParams(
            dimension_semantics=("parallel", "arbitrary"),
            vmem_limit_bytes=vmem_limit,
        ),
        cost_estimate=pl.CostEstimate(
            flops=3 * N * C * HW,
            transcendentals=0,
            bytes_accessed=N * C * HW * itemsize + 8 * C,
        ),
    )(x_r)

    # Tiny per-channel finalization + folding of the conditional affine in XLA.
    inv_cnt = jnp.float32(1.0 / (N * HW))
    mean = (s1[:, 0] * inv_cnt)[None, :]                             # (1, C)
    var = jnp.maximum(s2[:, 0][None, :] * inv_cnt - mean * mean, 0.0)
    rstd = lax.rsqrt(var + jnp.float32(eps))
    scale = gamma * rstd                                             # (N, C)
    bias = beta - mean * scale                                       # (N, C)

    out_r = pl.pallas_call(
        _cbn_apply_kernel,
        out_shape=jax.ShapeDtypeStruct((N, C, HW), x.dtype),
        grid_spec=pltpu.PrefetchScalarGridSpec(
            num_scalar_prefetch=0,
            grid=grid,
            in_specs=[
                _x_spec((N, tc, t_hw), lambda c, h: (0, c, h)),      # x tile
                pl.BlockSpec((tc, N), lambda c, h: (c, 0)),          # scale^T
                pl.BlockSpec((tc, N), lambda c, h: (c, 0)),          # bias^T
            ],
            out_specs=pl.BlockSpec((N, tc, t_hw), lambda c, h: (0, c, h)),
        ),
        compiler_params=pltpu.CompilerParams(
            dimension_semantics=("parallel", "parallel"),
            vmem_limit_bytes=vmem_limit,
        ),
        cost_estimate=pl.CostEstimate(
            flops=2 * N * C * HW,
            transcendentals=0,
            bytes_accessed=2 * N * C * HW * itemsize + 8 * N * C,
        ),
    )(x_r, scale.T, bias.T)

    return out_r.reshape(N, C, H, W)


# ----------------------------- reference & test -----------------------------


def _reference(x, y, w_gamma, w_beta, eps=1e-4):
    mean = jnp.mean(x, axis=(0, 2, 3), keepdims=True)
    var = jnp.mean((x - mean) ** 2, axis=(0, 2, 3), keepdims=True)   # biased
    x_hat = (x - mean) / jnp.sqrt(var + eps)
    gamma = y @ w_gamma.T + 1.0
    beta = y @ w_beta.T
    return gamma[:, :, None, None] * x_hat + beta[:, :, None, None]


def _make_inputs(key, batch, num_features, spatial, num_classes):
    kx, ky, kg, kb = jax.random.split(key, 4)
    x = jax.random.normal(kx, (batch, num_features, spatial, spatial),
                          jnp.float32)
    y = jax.random.normal(ky, (batch, num_classes), jnp.float32)
    # nn.Linear(num_classes, num_features, bias=False) default init:
    # U(-1/sqrt(in_features), 1/sqrt(in_features))
    bound = 1.0 / (num_classes ** 0.5)
    w_gamma = jax.random.uniform(kg, (num_features, num_classes), jnp.float32,
                                 minval=-bound, maxval=bound)
    w_beta = jax.random.uniform(kb, (num_features, num_classes), jnp.float32,
                                minval=-bound, maxval=bound)
    return x, y, w_gamma, w_beta


if __name__ == "__main__":
    key = jax.random.PRNGKey(0)
    k0, k1 = jax.random.split(key)

    # --- fast path (single-pass, channel-tiled) ---
    x, y, w_gamma, w_beta = _make_inputs(k0, batch=2, num_features=4,
                                         spatial=16, num_classes=8)
    out = conditional_batch_norm_2d(x, y, w_gamma, w_beta, eps=1e-4)
    out = jax.block_until_ready(out)
    ref = _reference(x, y, w_gamma, w_beta, eps=1e-4)
    assert out.shape == x.shape
    assert jnp.allclose(out, ref, atol=1e-4, rtol=1e-4)

    # --- two-pass fallback (forced via a tiny block budget; exercises the
    #     HW-split stats/apply pipeline and the ragged-tail masking) ---
    x2, y2, w_gamma2, w_beta2 = _make_inputs(k1, batch=2, num_features=16,
                                             spatial=12, num_classes=8)
    out2 = conditional_batch_norm_2d(x2, y2, w_gamma2, w_beta2, eps=1e-4,
                                     block_budget_bytes=64 * 1024)
    out2 = jax.block_until_ready(out2)
    ref2 = _reference(x2, y2, w_gamma2, w_beta2, eps=1e-4)
    assert out2.shape == x2.shape
    assert jnp.allclose(out2, ref2, atol=1e-4, rtol=1e-4)

    print("KERNEL_OK")
</pallas_src>

<mosaic_0001>
module attributes {stable_mosaic.version = 11 : i64} {
  func.func @_cbn_fused_kernel(%arg0: i32, %arg1: memref<2x4x256xf32, #tpu.memory_space<vmem>>, %arg2: memref<4x2xf32, #tpu.memory_space<vmem>>, %arg3: memref<4x2xf32, #tpu.memory_space<vmem>>, %arg4: memref<2x4x256xf32, #tpu.memory_space<vmem>>) attributes {dimension_semantics = [#tpu.dimension_semantics<parallel>], iteration_bounds = array<i64: 1>, scalar_prefetch = 0 : i64, scratch_operands = 0 : i64, tpu.core_type = #tpu.core_type<tc>, window_params = [{transform_indices = @transform_0, window_bounds = array<i64: 2, 4, 256>}, {transform_indices = @transform_1, window_bounds = array<i64: 4, 2>}, {transform_indices = @transform_2, window_bounds = array<i64: 4, 2>}, {transform_indices = @transform_3, window_bounds = array<i64: 2, 4, 256>}]} {
    %c0 = arith.constant 0 : index
    %c0_0 = arith.constant 0 : index
    %c0_1 = arith.constant 0 : index
    %0 = vector.load %arg1[%c0, %c0_0, %c0_1] : memref<2x4x256xf32, #tpu.memory_space<vmem>>, vector<2x4x256xf32>
    %cst = arith.constant dense<0.000000e+00> : vector<4xf32>
    %1 = vector.multi_reduction <add>, %0, %cst [0, 2] : vector<2x4x256xf32> to vector<4xf32>
    %2 = vector.shape_cast %1 : vector<4xf32> to vector<1x4x1xf32>
    %cst_2 = arith.constant 0.001953125 : f32
    %3 = vector.broadcast %cst_2 : f32 to vector<1x4x1xf32>
    %4 = arith.mulf %2, %3 : vector<1x4x1xf32>
    %5 = vector.broadcast %4 : vector<1x4x1xf32> to vector<2x4x256xf32>
    %6 = arith.subf %0, %5 : vector<2x4x256xf32>
    %7 = arith.mulf %6, %6 : vector<2x4x256xf32>
    %cst_3 = arith.constant dense<0.000000e+00> : vector<4xf32>
    %8 = vector.multi_reduction <add>, %7, %cst_3 [0, 2] : vector<2x4x256xf32> to vector<4xf32>
    %9 = vector.shape_cast %8 : vector<4xf32> to vector<1x4x1xf32>
    %cst_4 = arith.constant 0.001953125 : f32
    %10 = vector.broadcast %cst_4 : f32 to vector<1x4x1xf32>
    %11 = arith.mulf %9, %10 : vector<1x4x1xf32>
    %cst_5 = arith.constant 9.99999974E-5 : f32
    %12 = vector.broadcast %cst_5 : f32 to vector<1x4x1xf32>
    %13 = arith.addf %11, %12 : vector<1x4x1xf32>
    %14 = math.rsqrt %13 : vector<1x4x1xf32>
    %c0_6 = arith.constant 0 : index
    %c0_7 = arith.constant 0 : index
    %15 = vector.load %arg2[%c0_6, %c0_7] : memref<4x2xf32, #tpu.memory_space<vmem>>, vector<4x2xf32>
    %16 = tpu.transpose %15, [1, 0] : vector<4x2xf32> -> vector<2x4xf32>
    %17 = vector.shape_cast %16 : vector<2x4xf32> to vector<2x4x1xf32>
    %c0_8 = arith.constant 0 : index
    %c0_9 = arith.constant 0 : index
    %18 = vector.load %arg3[%c0_8, %c0_9] : memref<4x2xf32, #tpu.memory_space<vmem>>, vector<4x2xf32>
    %19 = tpu.transpose %18, [1, 0] : vector<4x2xf32> -> vector<2x4xf32>
    %20 = vector.shape_cast %19 : vector<2x4xf32> to vector<2x4x1xf32>
    %21 = vector.broadcast %14 : vector<1x4x1xf32> to vector<2x4x1xf32>
    %22 = arith.mulf %17, %21 : vector<2x4x1xf32>
    %23 = vector.broadcast %22 : vector<2x4x1xf32> to vector<2x4x256xf32>
    %24 = arith.mulf %6, %23 : vector<2x4x256xf32>
    %25 = vector.broadcast %20 : vector<2x4x1xf32> to vector<2x4x256xf32>
    %26 = arith.addf %24, %25 : vector<2x4x256xf32>
    %c0_10 = arith.constant 0 : index
    %c0_11 = arith.constant 0 : index
    %c0_12 = arith.constant 0 : index
    %27 = vector.load %arg4[%c0_10, %c0_11, %c0_12] : memref<2x4x256xf32, #tpu.memory_space<vmem>>, vector<2x4x256xf32>
    tpu.vector_store %arg4[%c0_10, %c0_11, %c0_12], %26 {strides = array<i32>} : memref<2x4x256xf32, #tpu.memory_space<vmem>>, vector<2x4x256xf32>,
    return
  }
  func.func @transform_0(%arg0: i32) -> (i32, i32, i32) {
    %c0_i32 = arith.constant 0 : i32
    %c0_i32_0 = arith.constant 0 : i32
    %c0_i32_1 = arith.constant 0 : i32
    return %c0_i32, %arg0, %c0_i32_0 : i32, i32, i32
  }
  func.func @transform_1(%arg0: i32) -> (i32, i32) {
    %c0_i32 = arith.constant 0 : i32
    %c0_i32_0 = arith.constant 0 : i32
    return %arg0, %c0_i32 : i32, i32
  }
  func.func @transform_2(%arg0: i32) -> (i32, i32) {
    %c0_i32 = arith.constant 0 : i32
    %c0_i32_0 = arith.constant 0 : i32
    return %arg0, %c0_i32 : i32, i32
  }
  func.func @transform_3(%arg0: i32) -> (i32, i32, i32) {
    %c0_i32 = arith.constant 0 : i32
    %c0_i32_0 = arith.constant 0 : i32
    %c0_i32_1 = arith.constant 0 : i32
    return %c0_i32, %arg0, %c0_i32_0 : i32, i32, i32
  }
}

</mosaic_0001>

<llo_original>
// kernel: tpu_custom_call.1
$region0: #{tpu_custom_call.1}
  #allocation0 [shape = 'u32[]', space=smem, size = 0x4, offset = 0x4, fixed_abs, tag = 'smem constant byte address 0x4 - core index']
  #allocation1 [shape = 'u32[72,128]{1,0:T(1,128)}', space=vmem, size = 0x9000, scoped, tag = 'internal scratch']
  %s0 = inlined_call_operand.hbm [shape: f32[2,4,256], index: 0, kind: input, shape index: {}]
  %s1 = inlined_call_operand.vmem [shape: f32[4,2], index: 1, kind: input, shape index: {}]
  %s2 = inlined_call_operand.vmem [shape: f32[4,2], index: 2, kind: input, shape index: {}]
  %s3 = inlined_call_operand.hbm [shape: f32[2,4,256], index: 3, kind: output, shape index: {}]
  %s4 = sld [smem:[#allocation0]]
  $region26: #{tpu_custom_call.1} parent=0
    _
  %s6 = ssub.s32 1, %s4
  %s7 = scalar_select 0, %s6, %s4
  $region1: #{tpu_custom_call.1} parent=0
    #allocation2 [shape = 'u8[8192]{0}', space=vmem, size = 0x2000, scoped, tag = 'input window, operand 0, single buffered']
    #allocation3 [shape = 's32[1]{0}', space=sflag, size = 0x4, scoped, tag = 'scoped memory for tpu_custom_call.1']
    #allocation4 [shape = 's32[1]{0}', space=sflag, size = 0x4, scoped, tag = 'scoped memory for tpu_custom_call.1']
    #allocation5 [shape = 'u8[8192]{0}', space=vmem, size = 0x2000, scoped, tag = 'output window, operand 0, single buffered']
    %8 = vsyncpa [#allocation3], 0
    %9 = vsyncpa [#allocation4], 0
    // Predicated region
    $region2: #{tpu_custom_call.1} parent=1 // pred_check
      _
    $region3: #{tpu_custom_call.1} parent=1 // pred_check_branch
      %11 = sbr.rel (0) target = $region5
    $region4: #{tpu_custom_call.1} parent=1 // pred_region
      %13 = vsyncadd [#allocation3], 0
      %s14 = sshll.u32 %s0, 4
      %s15 = int_to_ptr.hbm [resolvable:$true] %s14
      %s16 = sshll.u32 [#allocation2], 4
      %s17 = int_to_ptr.vmem [resolvable:$true] %s16
      %22 = dma.hbm_to_vmem [thread:$0]  %s15, 256, %s17, [#allocation3], 128, 128, 8
    $region5: #{tpu_custom_call.1} parent=1 // pred_fallthru
      _
    // Predicated region
    $region6: #{tpu_custom_call.1} parent=1 // pred_check
      _
    $region7: #{tpu_custom_call.1} parent=1 // pred_check_branch
      %24 = sbr.rel (0) target = $region9
    $region8: #{tpu_custom_call.1} parent=1 // pred_region
      _
    $region9: #{tpu_custom_call.1} parent=1 // pred_fallthru
      _
    // Predicated region
    $region10: #{tpu_custom_call.1} parent=1 // pred_check
      _
    $region11: #{tpu_custom_call.1} parent=1 // pred_check_branch
      %26 = sbr.rel (0) target = $region13
    $region12: #{tpu_custom_call.1} parent=1 // pred_region
      _
    $region13: #{tpu_custom_call.1} parent=1 // pred_fallthru
      _
    // Predicated region
    $region14: #{tpu_custom_call.1} parent=1 // pred_check
      _
    $region15: #{tpu_custom_call.1} parent=1 // pred_check_branch
      %28 = sbr.rel (0) target = $region17
    $region16: #{tpu_custom_call.1} parent=1 // pred_region
      %30 = dma.done [#allocation3], 256
    $region17: #{tpu_custom_call.1} parent=1 // pred_fallthru
      _
    %v31 = vld [vmem:[#allocation2] sm:$0xff]
    %v32 = vld [vmem:[#allocation2 + $0x8] sm:$0xff]
    %35 = vst [vmem:[#allocation1] ss:$2 sm:$0xff] %v31
    %v36 = vld.sshfl [vmem:[#allocation1] sm:$0xff pattern:$0x75316420]
    %v37 = vld.sshfl [vmem:[#allocation1 + $0x8] sm:$0xff pattern:$0x75316420]
    %s38 = scalar_lea.vmem [#allocation1], 16
    %39 = vst [vmem:[%s38] ss:$2 sm:$0xff] %v32
    %v40 = vld.sshfl [vmem:[#allocation1 + $0x10] sm:$0xff pattern:$0x75316420]
    %v41 = vld.sshfl [vmem:[#allocation1 + $0x18] sm:$0xff pattern:$0x75316420]
    %vm46 = vcmask 1043456
    %v47 = vsel %vm46, %v36, 0.0
    %v48 = vsel %vm46, %v37, 0.0
    %v49 = vadd.f32 %v47, %v48
    %v50 = vsel %vm46, %v40, 0.0
    %v51 = vadd.f32 %v49, %v50
    %v52 = vsel %vm46, %v41, 0.0
    %v53 = vadd.f32 %v51, %v52
    %54 = vadd.xlane.f32.xlu0 %v53
    %v55 = vpop.xlane.xlu0 %54
    %v56 = vmul.f32 %v55, 0.001953125
    %v59 = vunpack.c.l.s4 839922192
    %v60 = vunpack.c.0.s8 %v59
    %v61 = vperm.slane %v56, %v60
    %v63 = vsub.f32 %v31, %v61
    %v64 = vsub.f32 %v32, %v61
    %v65 = vmul.f32 %v63, %v63
    %v66 = vmul.f32 %v64, %v64
    %69 = vst [vmem:[#allocation1] ss:$2 sm:$0xff] %v65
    %v70 = vld.sshfl [vmem:[#allocation1] sm:$0xff pattern:$0x75316420]
    %v71 = vld.sshfl [vmem:[#allocation1 + $0x8] sm:$0xff pattern:$0x75316420]
    %s72 = scalar_lea.vmem [#allocation1], 16
    %73 = vst [vmem:[%s72] ss:$2 sm:$0xff] %v66
    %v74 = vld.sshfl [vmem:[#allocation1 + $0x10] sm:$0xff pattern:$0x75316420]
    %v75 = vld.sshfl [vmem:[#allocation1 + $0x18] sm:$0xff pattern:$0x75316420]
    %v80 = vsel %vm46, %v70, 0.0
    %v81 = vsel %vm46, %v71, 0.0
    %v82 = vadd.f32 %v80, %v81
    %v83 = vsel %vm46, %v74, 0.0
    %v84 = vadd.f32 %v82, %v83
    %v85 = vsel %vm46, %v75, 0.0
    %v86 = vadd.f32 %v84, %v85
    %87 = vadd.xlane.f32.xlu0 %v86
    %v88 = vpop.xlane.xlu0 %87
    %v89 = vmul.f32 %v88, 0.001953125
    %v90 = vadd.f32 %v89, 0.0001
    %v91 = vrsqrt.pop %v90
    %v92 = vmul.f32 %v91, %v90
    %v93 = vmul.f32 %v92, %v91
    %v94 = vmul.f32 0.5, %v93
    %v95 = vsub.f32 1.5, %v94
    %v96 = vmul.f32 %v91, %v95
    %vm97 = vweird.f32 %v90
    %vm98 = vweird.f32 %v91
    %vm99 = vmor %vm97, %vm98
    %v100 = vsel %vm99, %v91, %v96
    %v101 = vld [vmem:[%s1] sm:$0xf]
    %102 = vxpose.xlu0.b32.start [1/16] %v101, 128
    %103 = vxpose.xlu0.b32.cont [2/16] 0.0, 128
    %104 = vxpose.xlu0.b32.cont [3/16] 0.0, 128
    %105 = vxpose.xlu0.b32.cont [4/16] 0.0, 128
    %106 = vxpose.xlu0.b32.cont [5/16] 0.0, 128
    %107 = vxpose.xlu0.b32.cont [6/16] 0.0, 128
    %108 = vxpose.xlu0.b32.cont [7/16] 0.0, 128
    %109 = vxpose.xlu0.b32.cont [8/16] 0.0, 128
    %110 = vxpose.xlu0.b32.cont [9/16] 0.0, 128
    %111 = vxpose.xlu0.b32.cont [10/16] 0.0, 128
    %112 = vxpose.xlu0.b32.cont [11/16] 0.0, 128
    %113 = vxpose.xlu0.b32.cont [12/16] 0.0, 128
    %114 = vxpose.xlu0.b32.cont [13/16] 0.0, 128
    %115 = vxpose.xlu0.b32.cont [14/16] 0.0, 128
    %116 = vxpose.xlu0.b32.cont [15/16] 0.0, 128
    %117 = vxpose.xlu0.b32.end [16/16] 0.0, 128
    %v118 = vpop.trf.xlu0
    %v119 = vpop.trf.xlu0
    %v120 = vpop.trf.xlu0
    %v121 = vpop.trf.xlu0
    %v122 = vpop.trf.xlu0
    %v123 = vpop.trf.xlu0
    %v124 = vpop.trf.xlu0
    %v125 = vpop.trf.xlu0
    %v126 = vpop.trf.xlu0
    %v127 = vpop.trf.xlu0
    %v128 = vpop.trf.xlu0
    %v129 = vpop.trf.xlu0
    %v130 = vpop.trf.xlu0
    %v131 = vpop.trf.xlu0
    %v132 = vpop.trf.xlu0
    %v133 = vpop.trf.xlu0
    %v134 = vperm.slane %v118, 0
    %v135 = vlaneseq
    %v136 = vshrl.u32 %v135, 7
    %138 = vset.pattern.permute.xlu0 %v136
    %139 = vperm.xlu0 %138, %v134
    %v140 = vpop.permute.xlu0 %139
    %v141 = vperm.slane %v118, 1
    %v142 = vlaneseq
    %v143 = vshrl.u32 %v142, 7
    %145 = vset.pattern.permute.xlu0 %v143
    %146 = vperm.xlu0 %145, %v141
    %v147 = vpop.permute.xlu0 %146
    %v148 = vld [vmem:[%s2] sm:$0xf]
    %149 = vxpose.xlu0.b32.start [1/16] %v148, 128
    %150 = vxpose.xlu0.b32.cont [2/16] 0.0, 128
    %151 = vxpose.xlu0.b32.cont [3/16] 0.0, 128
    %152 = vxpose.xlu0.b32.cont [4/16] 0.0, 128
    %153 = vxpose.xlu0.b32.cont [5/16] 0.0, 128
    %154 = vxpose.xlu0.b32.cont [6/16] 0.0, 128
    %155 = vxpose.xlu0.b32.cont [7/16] 0.0, 128
    %156 = vxpose.xlu0.b32.cont [8/16] 0.0, 128
    %157 = vxpose.xlu0.b32.cont [9/16] 0.0, 128
    %158 = vxpose.xlu0.b32.cont [10/16] 0.0, 128
    %159 = vxpose.xlu0.b32.cont [11/16] 0.0, 128
    %160 = vxpose.xlu0.b32.cont [12/16] 0.0, 128
    %161 = vxpose.xlu0.b32.cont [13/16] 0.0, 128
    %162 = vxpose.xlu0.b32.cont [14/16] 0.0, 128
    %163 = vxpose.xlu0.b32.cont [15/16] 0.0, 128
    %164 = vxpose.xlu0.b32.end [16/16] 0.0, 128
    %v165 = vpop.trf.xlu0
    %v166 = vpop.trf.xlu0
    %v167 = vpop.trf.xlu0
    %v168 = vpop.trf.xlu0
    %v169 = vpop.trf.xlu0
    %v170 = vpop.trf.xlu0
    %v171 = vpop.trf.xlu0
    %v172 = vpop.trf.xlu0
    %v173 = vpop.trf.xlu0
    %v174 = vpop.trf.xlu0
    %v175 = vpop.trf.xlu0
    %v176 = vpop.trf.xlu0
    %v177 = vpop.trf.xlu0
    %v178 = vpop.trf.xlu0
    %v179 = vpop.trf.xlu0
    %v180 = vpop.trf.xlu0
    %v181 = vperm.slane %v165, 0
    %v182 = vlaneseq
    %v183 = vshrl.u32 %v182, 7
    %185 = vset.pattern.permute.xlu0 %v183
    %186 = vperm.xlu0 %185, %v181
    %v187 = vpop.permute.xlu0 %186
    %v188 = vperm.slane %v165, 1
    %v189 = vlaneseq
    %v190 = vshrl.u32 %v189, 7
    %192 = vset.pattern.permute.xlu0 %v190
    %193 = vperm.xlu0 %192, %v188
    %v194 = vpop.permute.xlu0 %193
    %v195 = vmul.f32 %v140, %v100
    %v196 = vmul.f32 %v147, %v100
    %v200 = vunpack.c.l.s4 839922192
    %v201 = vunpack.c.0.s8 %v200
    %v202 = vperm.slane %v195, %v201
    %v204 = vunpack.c.l.s4 839922192
    %v205 = vunpack.c.0.s8 %v204
    %v206 = vperm.slane %v196, %v205
    %v209 = vmul.f32 %v63, %v202
    %v210 = vmul.f32 %v64, %v206
    %v214 = vunpack.c.l.s4 839922192
    %v215 = vunpack.c.0.s8 %v214
    %v216 = vperm.slane %v187, %v215
    %v218 = vunpack.c.l.s4 839922192
    %v219 = vunpack.c.0.s8 %v218
    %v220 = vperm.slane %v194, %v219
    %v223 = vadd.f32 %v209, %v216
    %v224 = vadd.f32 %v210, %v220
    %225 = vst [vmem:[#allocation5] sm:$0xff] %v223
    %226 = vst [vmem:[#allocation5 + $0x8] sm:$0xff] %v224
    // Predicated region
    $region18: #{tpu_custom_call.1} parent=1 // pred_check
      _
    $region19: #{tpu_custom_call.1} parent=1 // pred_check_branch
      %228 = sbr.rel (0) target = $region21
    $region20: #{tpu_custom_call.1} parent=1 // pred_region
      %230 = vsyncadd [#allocation4], 0
      %s231 = sshll.u32 [#allocation5], 4
      %s232 = int_to_ptr.vmem [resolvable:$true] %s231
      %s233 = sshll.u32 %s3, 4
      %s234 = int_to_ptr.hbm [resolvable:$true] %s233
      %239 = dma.vmem_to_hbm [thread:$0]  %s232, 256, %s234, [#allocation4], 128, 128, 8
    $region21: #{tpu_custom_call.1} parent=1 // pred_fallthru
      _
    // Predicated region
    $region22: #{tpu_custom_call.1} parent=1 // pred_check
      _
    $region23: #{tpu_custom_call.1} parent=1 // pred_check_branch
      %241 = sbr.rel (0) target = $region25
    $region24: #{tpu_custom_call.1} parent=1 // pred_region
      %243 = dma.done [#allocation4], 256
    $region25: #{tpu_custom_call.1} parent=1 // pred_fallthru
      _
    %244 = vsyncpa [#allocation3], 1
    %245 = vsyncpa [#allocation4], 1

</llo_original>
